<compile_context>
chip_gen: v5e
topology: v5e:2x2
jax: 0.10.0
libtpu: 0.0.40
codegen_flags: <defaults>
</compile_context>

<pallas_src>
import jax
import jax.numpy as jnp
from jax.experimental import pallas as pl
from jax.experimental.pallas import tpu as pltpu


def _make_kernel(K, C_in, C_out, L, L_out, padding, block_n, r_pad):
    n_tap_rows = K * C_in

    def kernel(x_ref, w_ref, o_ref, taps_scr):
        # x_ref:    (block_n, C_in, L)      f32, NCL block (length on lanes)
        # w_ref:    (C_out, r_pad)          bf16, BN-folded weight + shift column + pad
        # o_ref:    (block_n, C_out, L_out)
        # taps_scr: (r_pad, L)              f32 VMEM staging tile for the stacked taps
        w = w_ref[...]

        # Rows [K*C_in, r_pad): one ones row (carries the BN shift through the matmul)
        # followed by zero padding rows.  Written once per grid step.
        tail_rows = r_pad - n_tap_rows
        row = jax.lax.broadcasted_iota(jnp.int32, (tail_rows, L), 0)
        taps_scr[n_tap_rows:, :] = jnp.where(row == 0, 1.0, 0.0)

        # Per-tap zero-padding masks (shared by every sample in the block).
        lane = jax.lax.broadcasted_iota(jnp.int32, (C_in, L), 1)
        masks = {}
        for k in range(K):
            if k != padding:
                src = lane + (k - padding)
                masks[k] = (src >= 0) & (src < L)

        for b in range(block_n):                          # small static unroll
            xb = x_ref[b]                                 # (C_in, L) f32, loaded once
            for k in range(K):
                if k == padding:
                    tap = xb                              # no shift needed
                else:
                    # tap[c, l] = x[c, l + k - padding], zero where the source index
                    # falls outside [0, L)  (== the conv's zero padding).
                    tap = pltpu.roll(xb, (padding - k) % L, 1)   # XLU lane rotate
                    tap = jnp.where(masks[k], tap, 0.0)
                taps_scr[k * C_in:(k + 1) * C_in, :] = tap

            tb = taps_scr[...].astype(jnp.bfloat16)       # (r_pad, L) bf16 operand
            # Single fused matmul: conv taps + BN scale + BN shift in one contraction.
            yb = jnp.dot(w, tb, preferred_element_type=jnp.float32)   # (C_out, L) f32
            o_ref[b] = jnp.maximum(yb[:, :L_out], 0.0).astype(o_ref.dtype)  # ReLU

    return kernel


def basic_conv1d(x_ncl, weight, gamma, beta, running_mean, running_var,
                 *, padding=1, eps=1e-3, block_n=8):
    """Fused Conv1d(bias=False, stride=1) + BatchNorm1d(eval) + ReLU.

    x_ncl: (N, C_in, L) f32, channels-first.  weight: (C_out, C_in, K).
    Returns (N, C_out, L_out) with L_out = L + 2*padding - K + 1.
    """
    N, C_in, L = x_ncl.shape
    C_out, _, K = weight.shape
    L_out = L + 2 * padding - K + 1
    assert 0 < L_out <= L, "kernel assumes a 'same'/'valid'-style conv (L_out <= L)"
    assert max(padding, K - 1 - padding) < L

    block_n = max(1, min(block_n, N))
    assert N % block_n == 0, "N must be divisible by block_n"
    grid = (N // block_n,)

    # Fold eval-mode BatchNorm (done once in the wrapper, O(C_out*C_in*K) work):
    #   scale goes into the conv weight, shift becomes an extra "bias" column that the
    #   kernel's ones-row picks up, so the whole op is a single matmul per sample.
    scale = gamma / jnp.sqrt(running_var + eps)                    # (C_out,)
    shift = beta - running_mean * scale                            # (C_out,)
    w2 = jnp.transpose(weight * scale[:, None, None], (0, 2, 1))   # (C_out, K, C_in)
    w2 = w2.reshape(C_out, K * C_in)
    w2 = jnp.concatenate([w2, shift[:, None]], axis=1)             # shift column
    r = K * C_in + 1
    r_pad = ((r + 7) // 8) * 8                                     # sublane-align depth
    if r_pad > r:
        w2 = jnp.pad(w2, ((0, 0), (0, r_pad - r)))
    w2 = w2.astype(jnp.bfloat16)                                   # MXU-native dtype

    # Explicit VMEM budget: double-buffered x/out tiles + weight + staging scratch,
    # with generous headroom, capped well under v7x's 64 MiB physical VMEM.
    tile_bytes = (2 * block_n * (C_in * L + C_out * L_out) * 4
                  + 2 * C_out * r_pad * 2 + r_pad * L * 4)
    vmem_limit = int(min(48 * 1024 * 1024, max(16 * 1024 * 1024, 8 * tile_bytes)))

    return pl.pallas_call(
        _make_kernel(K, C_in, C_out, L, L_out, padding, block_n, r_pad),
        out_shape=jax.ShapeDtypeStruct((N, C_out, L_out), x_ncl.dtype),
        grid=grid,
        in_specs=[
            pl.BlockSpec((block_n, C_in, L), lambda g: (g, 0, 0)),
            pl.BlockSpec((C_out, r_pad), lambda g: (0, 0)),
        ],
        out_specs=pl.BlockSpec((block_n, C_out, L_out), lambda g: (g, 0, 0)),
        scratch_shapes=[pltpu.VMEM((r_pad, L), jnp.float32)],
        compiler_params=pltpu.CompilerParams(
            dimension_semantics=("parallel",),
            vmem_limit_bytes=vmem_limit),
    )(x_ncl, w2)


def _reference(x_ncl, weight, gamma, beta, running_mean, running_var,
               *, padding=1, eps=1e-3):
    y = jax.lax.conv_general_dilated(
        x_ncl, weight, window_strides=(1,), padding=[(padding, padding)],
        dimension_numbers=("NCH", "OIH", "NCH"))
    scale = gamma / jnp.sqrt(running_var + eps)
    y = (y - running_mean[None, :, None]) * scale[None, :, None] + beta[None, :, None]
    return jnp.maximum(y, 0.0)


if __name__ == "__main__":
    # BasicConv1d(in_channels=4, out_channels=8, kernel_size=3, padding=1).
    # L is a multiple of 128 so the x/out tiles are lane-dense; 8 samples split into
    # 2 grid steps of 4 samples each ("parallel" -> both v7x TensorCores busy).
    N, C_in, C_out, L, K, PAD = 8, 4, 8, 128, 3, 1

    key = jax.random.PRNGKey(0)
    kx, kw, kg, kb, km, kv = jax.random.split(key, 6)

    x = jax.random.normal(kx, (N, C_in, L), dtype=jnp.float32)
    weight = jax.random.normal(kw, (C_out, C_in, K), dtype=jnp.float32) * 0.1
    gamma = jax.random.normal(kg, (C_out,), dtype=jnp.float32) * 0.1 + 1.0
    beta = jax.random.normal(kb, (C_out,), dtype=jnp.float32) * 0.1
    running_mean = jax.random.normal(km, (C_out,), dtype=jnp.float32) * 0.1
    running_var = jax.random.uniform(kv, (C_out,), dtype=jnp.float32,
                                     minval=0.5, maxval=1.5)

    out = basic_conv1d(x, weight, gamma, beta, running_mean, running_var,
                       padding=PAD, eps=1e-3, block_n=4)
    out = jax.block_until_ready(out)

    ref = _reference(x, weight, gamma, beta, running_mean, running_var,
                     padding=PAD, eps=1e-3)
    assert out.shape == ref.shape == (N, C_out, L)
    # Kernel uses bf16 MXU operands (f32 accumulate); compare against the all-f32
    # reference with a bf16-appropriate tolerance.
    max_err = float(jnp.max(jnp.abs(out - ref)))
    assert jnp.allclose(out, ref, atol=3e-2, rtol=3e-2), max_err

    print("KERNEL_OK")
</pallas_src>

<mosaic_0001>
module attributes {stable_mosaic.version = 11 : i64} {
  func.func @kernel(%arg0: i32, %arg1: memref<4x4x128xf32, #tpu.memory_space<vmem>>, %arg2: memref<8x16xbf16, #tpu.memory_space<vmem>>, %arg3: memref<4x8x128xf32, #tpu.memory_space<vmem>>, %arg4: memref<16x128xf32, #tpu.memory_space<vmem>>) attributes {dimension_semantics = [#tpu.dimension_semantics<parallel>], iteration_bounds = array<i64: 2>, scalar_prefetch = 0 : i64, scratch_operands = 1 : i64, tpu.core_type = #tpu.core_type<tc>, window_params = [{transform_indices = @transform_0, window_bounds = array<i64: 4, 4, 128>}, {pipeline_mode = #tpu.pipeline_mode<synchronous>, transform_indices = @transform_1, window_bounds = array<i64: 8, 16>}, {transform_indices = @transform_2, window_bounds = array<i64: 4, 8, 128>}]} {
    %c0 = arith.constant 0 : index
    %c0_0 = arith.constant 0 : index
    %0 = vector.load %arg2[%c0, %c0_0] : memref<8x16xbf16, #tpu.memory_space<vmem>>, vector<8x16xbf16>
    %1 = tpu.iota {dimensions = array<i32: 0>} : vector<4x128xi32>
    %c0_i32 = arith.constant 0 : i32
    %2 = vector.broadcast %c0_i32 : i32 to vector<4x128xi32>
    %3 = arith.cmpi eq, %1, %2 : vector<4x128xi32>
    %cst = arith.constant 1.000000e+00 : f32
    %cst_1 = arith.constant 0.000000e+00 : f32
    %4 = vector.broadcast %cst : f32 to vector<4x128xf32>
    %5 = vector.broadcast %cst_1 : f32 to vector<4x128xf32>
    %6 = arith.select %3, %4, %5 : vector<4x128xi1>, vector<4x128xf32>
    %c12 = arith.constant 12 : index
    %c0_2 = arith.constant 0 : index
    %7 = vector.load %arg4[%c12, %c0_2] : memref<16x128xf32, #tpu.memory_space<vmem>>, vector<4x128xf32>
    tpu.vector_store %arg4[%c12, %c0_2], %6 {strides = array<i32>} : memref<16x128xf32, #tpu.memory_space<vmem>>, vector<4x128xf32>,
    %8 = tpu.iota {dimensions = array<i32: 1>} : vector<4x128xi32>
    %c-1_i32 = arith.constant -1 : i32
    %9 = vector.broadcast %c-1_i32 : i32 to vector<4x128xi32>
    %10 = arith.addi %8, %9 : vector<4x128xi32>
    %c0_i32_3 = arith.constant 0 : i32
    %11 = vector.broadcast %c0_i32_3 : i32 to vector<4x128xi32>
    %12 = arith.cmpi sge, %10, %11 : vector<4x128xi32>
    %c128_i32 = arith.constant 128 : i32
    %13 = vector.broadcast %c128_i32 : i32 to vector<4x128xi32>
    %14 = arith.cmpi slt, %10, %13 : vector<4x128xi32>
    %15 = arith.andi %12, %14 : vector<4x128xi1>
    %c1_i32 = arith.constant 1 : i32
    %16 = vector.broadcast %c1_i32 : i32 to vector<4x128xi32>
    %17 = arith.addi %8, %16 : vector<4x128xi32>
    %c0_i32_4 = arith.constant 0 : i32
    %18 = vector.broadcast %c0_i32_4 : i32 to vector<4x128xi32>
    %19 = arith.cmpi sge, %17, %18 : vector<4x128xi32>
    %c128_i32_5 = arith.constant 128 : i32
    %20 = vector.broadcast %c128_i32_5 : i32 to vector<4x128xi32>
    %21 = arith.cmpi slt, %17, %20 : vector<4x128xi32>
    %22 = arith.andi %19, %21 : vector<4x128xi1>
    %c0_6 = arith.constant 0 : index
    %c0_7 = arith.constant 0 : index
    %c0_8 = arith.constant 0 : index
    %23 = vector.load %arg1[%c0_6, %c0_7, %c0_8] : memref<4x4x128xf32, #tpu.memory_space<vmem>>, vector<1x4x128xf32>
    %24 = vector.shape_cast %23 : vector<1x4x128xf32> to vector<4x128xf32>
    %c1_i32_9 = arith.constant 1 : i32
    %25 = tpu.dynamic_rotate %24 by %c1_i32_9 dim 1 : vector<4x128xf32>, i32 -> vector<4x128xf32>
    %cst_10 = arith.constant 0.000000e+00 : f32
    %26 = vector.broadcast %cst_10 : f32 to vector<4x128xf32>
    %27 = arith.select %15, %25, %26 : vector<4x128xi1>, vector<4x128xf32>
    %c0_11 = arith.constant 0 : index
    %c0_12 = arith.constant 0 : index
    %28 = vector.load %arg4[%c0_11, %c0_12] : memref<16x128xf32, #tpu.memory_space<vmem>>, vector<4x128xf32>
    tpu.vector_store %arg4[%c0_11, %c0_12], %27 {strides = array<i32>} : memref<16x128xf32, #tpu.memory_space<vmem>>, vector<4x128xf32>,
    %c4 = arith.constant 4 : index
    %c0_13 = arith.constant 0 : index
    %29 = vector.load %arg4[%c4, %c0_13] : memref<16x128xf32, #tpu.memory_space<vmem>>, vector<4x128xf32>
    tpu.vector_store %arg4[%c4, %c0_13], %24 {strides = array<i32>} : memref<16x128xf32, #tpu.memory_space<vmem>>, vector<4x128xf32>,
    %c127_i32 = arith.constant 127 : i32
    %30 = tpu.dynamic_rotate %24 by %c127_i32 dim 1 : vector<4x128xf32>, i32 -> vector<4x128xf32>
    %cst_14 = arith.constant 0.000000e+00 : f32
    %31 = vector.broadcast %cst_14 : f32 to vector<4x128xf32>
    %32 = arith.select %22, %30, %31 : vector<4x128xi1>, vector<4x128xf32>
    %c8 = arith.constant 8 : index
    %c0_15 = arith.constant 0 : index
    %33 = vector.load %arg4[%c8, %c0_15] : memref<16x128xf32, #tpu.memory_space<vmem>>, vector<4x128xf32>
    tpu.vector_store %arg4[%c8, %c0_15], %32 {strides = array<i32>} : memref<16x128xf32, #tpu.memory_space<vmem>>, vector<4x128xf32>,
    %c0_16 = arith.constant 0 : index
    %c0_17 = arith.constant 0 : index
    %34 = vector.load %arg4[%c0_16, %c0_17] : memref<16x128xf32, #tpu.memory_space<vmem>>, vector<16x128xf32>
    %35 = arith.truncf %34 : vector<16x128xf32> to vector<16x128xbf16>
    %cst_18 = arith.constant dense<0.000000e+00> : vector<8x128xf32>
    %36 = tpu.matmul %0, %35, %cst_18 {dimension_numbers = #tpu.dot_dimension_numbers<[1], [0], [0], [1], [0, 0, 1, 1], [], []>} : vector<8x16xbf16>, vector<16x128xbf16>, vector<8x128xf32> -> vector<8x128xf32>
    %cst_19 = arith.constant 0.000000e+00 : f32
    %37 = vector.broadcast %cst_19 : f32 to vector<8x128xf32>
    %38 = arith.maximumf %36, %37 : vector<8x128xf32>
    %c0_20 = arith.constant 0 : index
    %c0_21 = arith.constant 0 : index
    %c0_22 = arith.constant 0 : index
    %39 = vector.load %arg3[%c0_20, %c0_21, %c0_22] : memref<4x8x128xf32, #tpu.memory_space<vmem>>, vector<1x8x128xf32>
    %40 = vector.shape_cast %39 : vector<1x8x128xf32> to vector<8x128xf32>
    %41 = vector.shape_cast %38 : vector<8x128xf32> to vector<1x8x128xf32>
    tpu.vector_store %arg3[%c0_20, %c0_21, %c0_22], %41 {strides = array<i32>} : memref<4x8x128xf32, #tpu.memory_space<vmem>>, vector<1x8x128xf32>,
    %c1 = arith.constant 1 : index
    %c0_23 = arith.constant 0 : index
    %c0_24 = arith.constant 0 : index
    %42 = vector.load %arg1[%c1, %c0_23, %c0_24] : memref<4x4x128xf32, #tpu.memory_space<vmem>>, vector<1x4x128xf32>
    %43 = vector.shape_cast %42 : vector<1x4x128xf32> to vector<4x128xf32>
    %c1_i32_25 = arith.constant 1 : i32
    %44 = tpu.dynamic_rotate %43 by %c1_i32_25 dim 1 : vector<4x128xf32>, i32 -> vector<4x128xf32>
    %cst_26 = arith.constant 0.000000e+00 : f32
    %45 = vector.broadcast %cst_26 : f32 to vector<4x128xf32>
    %46 = arith.select %15, %44, %45 : vector<4x128xi1>, vector<4x128xf32>
    %c0_27 = arith.constant 0 : index
    %c0_28 = arith.constant 0 : index
    %47 = vector.load %arg4[%c0_27, %c0_28] : memref<16x128xf32, #tpu.memory_space<vmem>>, vector<4x128xf32>
    tpu.vector_store %arg4[%c0_27, %c0_28], %46 {strides = array<i32>} : memref<16x128xf32, #tpu.memory_space<vmem>>, vector<4x128xf32>,
    %c4_29 = arith.constant 4 : index
    %c0_30 = arith.constant 0 : index
    %48 = vector.load %arg4[%c4_29, %c0_30] : memref<16x128xf32, #tpu.memory_space<vmem>>, vector<4x128xf32>
    tpu.vector_store %arg4[%c4_29, %c0_30], %43 {strides = array<i32>} : memref<16x128xf32, #tpu.memory_space<vmem>>, vector<4x128xf32>,
    %c127_i32_31 = arith.constant 127 : i32
    %49 = tpu.dynamic_rotate %43 by %c127_i32_31 dim 1 : vector<4x128xf32>, i32 -> vector<4x128xf32>
    %cst_32 = arith.constant 0.000000e+00 : f32
    %50 = vector.broadcast %cst_32 : f32 to vector<4x128xf32>
    %51 = arith.select %22, %49, %50 : vector<4x128xi1>, vector<4x128xf32>
    %c8_33 = arith.constant 8 : index
    %c0_34 = arith.constant 0 : index
    %52 = vector.load %arg4[%c8_33, %c0_34] : memref<16x128xf32, #tpu.memory_space<vmem>>, vector<4x128xf32>
    tpu.vector_store %arg4[%c8_33, %c0_34], %51 {strides = array<i32>} : memref<16x128xf32, #tpu.memory_space<vmem>>, vector<4x128xf32>,
    %c0_35 = arith.constant 0 : index
    %c0_36 = arith.constant 0 : index
    %53 = vector.load %arg4[%c0_35, %c0_36] : memref<16x128xf32, #tpu.memory_space<vmem>>, vector<16x128xf32>
    %54 = arith.truncf %53 : vector<16x128xf32> to vector<16x128xbf16>
    %cst_37 = arith.constant dense<0.000000e+00> : vector<8x128xf32>
    %55 = tpu.matmul %0, %54, %cst_37 {dimension_numbers = #tpu.dot_dimension_numbers<[1], [0], [0], [1], [0, 0, 1, 1], [], []>} : vector<8x16xbf16>, vector<16x128xbf16>, vector<8x128xf32> -> vector<8x128xf32>
    %cst_38 = arith.constant 0.000000e+00 : f32
    %56 = vector.broadcast %cst_38 : f32 to vector<8x128xf32>
    %57 = arith.maximumf %55, %56 : vector<8x128xf32>
    %c1_39 = arith.constant 1 : index
    %c0_40 = arith.constant 0 : index
    %c0_41 = arith.constant 0 : index
    %58 = vector.load %arg3[%c1_39, %c0_40, %c0_41] : memref<4x8x128xf32, #tpu.memory_space<vmem>>, vector<1x8x128xf32>
    %59 = vector.shape_cast %58 : vector<1x8x128xf32> to vector<8x128xf32>
    %60 = vector.shape_cast %57 : vector<8x128xf32> to vector<1x8x128xf32>
    tpu.vector_store %arg3[%c1_39, %c0_40, %c0_41], %60 {strides = array<i32>} : memref<4x8x128xf32, #tpu.memory_space<vmem>>, vector<1x8x128xf32>,
    %c2 = arith.constant 2 : index
    %c0_42 = arith.constant 0 : index
    %c0_43 = arith.constant 0 : index
    %61 = vector.load %arg1[%c2, %c0_42, %c0_43] : memref<4x4x128xf32, #tpu.memory_space<vmem>>, vector<1x4x128xf32>
    %62 = vector.shape_cast %61 : vector<1x4x128xf32> to vector<4x128xf32>
    %c1_i32_44 = arith.constant 1 : i32
    %63 = tpu.dynamic_rotate %62 by %c1_i32_44 dim 1 : vector<4x128xf32>, i32 -> vector<4x128xf32>
    %cst_45 = arith.constant 0.000000e+00 : f32
    %64 = vector.broadcast %cst_45 : f32 to vector<4x128xf32>
    %65 = arith.select %15, %63, %64 : vector<4x128xi1>, vector<4x128xf32>
    %c0_46 = arith.constant 0 : index
    %c0_47 = arith.constant 0 : index
    %66 = vector.load %arg4[%c0_46, %c0_47] : memref<16x128xf32, #tpu.memory_space<vmem>>, vector<4x128xf32>
    tpu.vector_store %arg4[%c0_46, %c0_47], %65 {strides = array<i32>} : memref<16x128xf32, #tpu.memory_space<vmem>>, vector<4x128xf32>,
    %c4_48 = arith.constant 4 : index
    %c0_49 = arith.constant 0 : index
    %67 = vector.load %arg4[%c4_48, %c0_49] : memref<16x128xf32, #tpu.memory_space<vmem>>, vector<4x128xf32>
    tpu.vector_store %arg4[%c4_48, %c0_49], %62 {strides = array<i32>} : memref<16x128xf32, #tpu.memory_space<vmem>>, vector<4x128xf32>,
    %c127_i32_50 = arith.constant 127 : i32
    %68 = tpu.dynamic_rotate %62 by %c127_i32_50 dim 1 : vector<4x128xf32>, i32 -> vector<4x128xf32>
    %cst_51 = arith.constant 0.000000e+00 : f32
    %69 = vector.broadcast %cst_51 : f32 to vector<4x128xf32>
    %70 = arith.select %22, %68, %69 : vector<4x128xi1>, vector<4x128xf32>
    %c8_52 = arith.constant 8 : index
    %c0_53 = arith.constant 0 : index
    %71 = vector.load %arg4[%c8_52, %c0_53] : memref<16x128xf32, #tpu.memory_space<vmem>>, vector<4x128xf32>
    tpu.vector_store %arg4[%c8_52, %c0_53], %70 {strides = array<i32>} : memref<16x128xf32, #tpu.memory_space<vmem>>, vector<4x128xf32>,
    %c0_54 = arith.constant 0 : index
    %c0_55 = arith.constant 0 : index
    %72 = vector.load %arg4[%c0_54, %c0_55] : memref<16x128xf32, #tpu.memory_space<vmem>>, vector<16x128xf32>
    %73 = arith.truncf %72 : vector<16x128xf32> to vector<16x128xbf16>
    %cst_56 = arith.constant dense<0.000000e+00> : vector<8x128xf32>
    %74 = tpu.matmul %0, %73, %cst_56 {dimension_numbers = #tpu.dot_dimension_numbers<[1], [0], [0], [1], [0, 0, 1, 1], [], []>} : vector<8x16xbf16>, vector<16x128xbf16>, vector<8x128xf32> -> vector<8x128xf32>
    %cst_57 = arith.constant 0.000000e+00 : f32
    %75 = vector.broadcast %cst_57 : f32 to vector<8x128xf32>
    %76 = arith.maximumf %74, %75 : vector<8x128xf32>
    %c2_58 = arith.constant 2 : index
    %c0_59 = arith.constant 0 : index
    %c0_60 = arith.constant 0 : index
    %77 = vector.load %arg3[%c2_58, %c0_59, %c0_60] : memref<4x8x128xf32, #tpu.memory_space<vmem>>, vector<1x8x128xf32>
    %78 = vector.shape_cast %77 : vector<1x8x128xf32> to vector<8x128xf32>
    %79 = vector.shape_cast %76 : vector<8x128xf32> to vector<1x8x128xf32>
    tpu.vector_store %arg3[%c2_58, %c0_59, %c0_60], %79 {strides = array<i32>} : memref<4x8x128xf32, #tpu.memory_space<vmem>>, vector<1x8x128xf32>,
    %c3 = arith.constant 3 : index
    %c0_61 = arith.constant 0 : index
    %c0_62 = arith.constant 0 : index
    %80 = vector.load %arg1[%c3, %c0_61, %c0_62] : memref<4x4x128xf32, #tpu.memory_space<vmem>>, vector<1x4x128xf32>
    %81 = vector.shape_cast %80 : vector<1x4x128xf32> to vector<4x128xf32>
    %c1_i32_63 = arith.constant 1 : i32
    %82 = tpu.dynamic_rotate %81 by %c1_i32_63 dim 1 : vector<4x128xf32>, i32 -> vector<4x128xf32>
    %cst_64 = arith.constant 0.000000e+00 : f32
    %83 = vector.broadcast %cst_64 : f32 to vector<4x128xf32>
    %84 = arith.select %15, %82, %83 : vector<4x128xi1>, vector<4x128xf32>
    %c0_65 = arith.constant 0 : index
    %c0_66 = arith.constant 0 : index
    %85 = vector.load %arg4[%c0_65, %c0_66] : memref<16x128xf32, #tpu.memory_space<vmem>>, vector<4x128xf32>
    tpu.vector_store %arg4[%c0_65, %c0_66], %84 {strides = array<i32>} : memref<16x128xf32, #tpu.memory_space<vmem>>, vector<4x128xf32>,
    %c4_67 = arith.constant 4 : index
    %c0_68 = arith.constant 0 : index
    %86 = vector.load %arg4[%c4_67, %c0_68] : memref<16x128xf32, #tpu.memory_space<vmem>>, vector<4x128xf32>
    tpu.vector_store %arg4[%c4_67, %c0_68], %81 {strides = array<i32>} : memref<16x128xf32, #tpu.memory_space<vmem>>, vector<4x128xf32>,
    %c127_i32_69 = arith.constant 127 : i32
    %87 = tpu.dynamic_rotate %81 by %c127_i32_69 dim 1 : vector<4x128xf32>, i32 -> vector<4x128xf32>
    %cst_70 = arith.constant 0.000000e+00 : f32
    %88 = vector.broadcast %cst_70 : f32 to vector<4x128xf32>
    %89 = arith.select %22, %87, %88 : vector<4x128xi1>, vector<4x128xf32>
    %c8_71 = arith.constant 8 : index
    %c0_72 = arith.constant 0 : index
    %90 = vector.load %arg4[%c8_71, %c0_72] : memref<16x128xf32, #tpu.memory_space<vmem>>, vector<4x128xf32>
    tpu.vector_store %arg4[%c8_71, %c0_72], %89 {strides = array<i32>} : memref<16x128xf32, #tpu.memory_space<vmem>>, vector<4x128xf32>,
    %c0_73 = arith.constant 0 : index
    %c0_74 = arith.constant 0 : index
    %91 = vector.load %arg4[%c0_73, %c0_74] : memref<16x128xf32, #tpu.memory_space<vmem>>, vector<16x128xf32>
    %92 = arith.truncf %91 : vector<16x128xf32> to vector<16x128xbf16>
    %cst_75 = arith.constant dense<0.000000e+00> : vector<8x128xf32>
    %93 = tpu.matmul %0, %92, %cst_75 {dimension_numbers = #tpu.dot_dimension_numbers<[1], [0], [0], [1], [0, 0, 1, 1], [], []>} : vector<8x16xbf16>, vector<16x128xbf16>, vector<8x128xf32> -> vector<8x128xf32>
    %cst_76 = arith.constant 0.000000e+00 : f32
    %94 = vector.broadcast %cst_76 : f32 to vector<8x128xf32>
    %95 = arith.maximumf %93, %94 : vector<8x128xf32>
    %c3_77 = arith.constant 3 : index
    %c0_78 = arith.constant 0 : index
    %c0_79 = arith.constant 0 : index
    %96 = vector.load %arg3[%c3_77, %c0_78, %c0_79] : memref<4x8x128xf32, #tpu.memory_space<vmem>>, vector<1x8x128xf32>
    %97 = vector.shape_cast %96 : vector<1x8x128xf32> to vector<8x128xf32>
    %98 = vector.shape_cast %95 : vector<8x128xf32> to vector<1x8x128xf32>
    tpu.vector_store %arg3[%c3_77, %c0_78, %c0_79], %98 {strides = array<i32>} : memref<4x8x128xf32, #tpu.memory_space<vmem>>, vector<1x8x128xf32>,
    return
  }
  func.func @transform_0(%arg0: i32) -> (i32, i32, i32) {
    %c0_i32 = arith.constant 0 : i32
    %c0_i32_0 = arith.constant 0 : i32
    %c0_i32_1 = arith.constant 0 : i32
    return %arg0, %c0_i32, %c0_i32_0 : i32, i32, i32
  }
  func.func @transform_1(%arg0: i32) -> (i32, i32) {
    %c0_i32 = arith.constant 0 : i32
    %c0_i32_0 = arith.constant 0 : i32
    %c0_i32_1 = arith.constant 0 : i32
    return %c0_i32, %c0_i32_0 : i32, i32
  }
  func.func @transform_2(%arg0: i32) -> (i32, i32, i32) {
    %c0_i32 = arith.constant 0 : i32
    %c0_i32_0 = arith.constant 0 : i32
    %c0_i32_1 = arith.constant 0 : i32
    return %arg0, %c0_i32, %c0_i32_0 : i32, i32, i32
  }
}

</mosaic_0001>

<llo_original>
// kernel: tpu_custom_call.1
$region0: #{tpu_custom_call.1}
  #allocation0 [shape = 'u32[]', space=smem, size = 0x4, offset = 0x4, fixed_abs, tag = 'smem constant byte address 0x4 - core index']
  #allocation1 [shape = 'u32[72,128]{1,0:T(1,128)}', space=vmem, size = 0x9000, scoped, tag = 'internal scratch']
  #allocation2 [shape = 'f32[16,128]{1,0:T(8,128)}', space=vmem, size = 0x2000, scoped, tag = 'scratch operand']
  %s0 = inlined_call_operand.hbm [shape: f32[8,4,128], index: 0, kind: input, shape index: {}]
  %s1 = inlined_call_operand.hbm [shape: bf16[8,16], index: 1, kind: input, shape index: {}]
  %s2 = inlined_call_operand.hbm [shape: f32[8,8,128], index: 2, kind: output, shape index: {}]
  %s3 = sld [smem:[#allocation0]]
  $region49: #{tpu_custom_call.1} parent=0
    _
  %s5 = ssub.s32 1, %s3
  %s6 = scalar_select 0, %s5, %s3
  $region1: #{tpu_custom_call.1} parent=0
    #allocation3 [shape = 'u8[16384]{0}', space=vmem, size = 0x4000, scoped, tag = 'input window, operand 0']
    #allocation4 [shape = 's32[2]{0}', space=sflag, size = 0x8, scoped, tag = 'scoped memory for tpu_custom_call.1']
    #allocation5 [shape = 's32[2]{0}', space=sflag, size = 0x8, scoped, tag = 'scoped memory for tpu_custom_call.1']
    #allocation6 [shape = 'u8[2048]{0}', space=vmem, size = 0x800, scoped, tag = 'input window, operand 1, single buffered']
    #allocation7 [shape = 's32[1]{0}', space=sflag, size = 0x4, scoped, tag = 'scoped memory for tpu_custom_call.1']
    #allocation8 [shape = 'u8[32768]{0}', space=vmem, size = 0x8000, scoped, tag = 'output window, operand 0']
    %7 = vsyncpa [#allocation4], 0
    %s8 = scalar_lea.sflag [#allocation4], 1
    %9 = vsyncpa %s8, 0
    %10 = vsyncpa [#allocation7], 0
    %11 = vsyncpa [#allocation5], 0
    %s12 = scalar_lea.sflag [#allocation5], 1
    %13 = vsyncpa %s12, 0
    loop: start=0, step=1, limit=4
    $region2: #{tpu_custom_call.1} parent=1 // loop_pre_header
      _
    $region3: #{tpu_custom_call.1} parent=1 // loop_header
      %s15 = sphi 0, %s19
      %p16 = scmp.ge.s32.totalorder %s15, 4
      %s25 = sphi 0, %s27
      %s28 = sphi 0, %s25
      %s29 = sphi 0, %s28
      %s45 = sphi 0, %s29
      %s49 = sphi 0, %s49
      %s51 = sphi 0, %s49
      %s52 = sphi 0, %s51
      %s66 = sphi 0, %s52
      %s72 = sphi 0, %s74
      %s75 = sphi 0, %s72
      %s76 = sphi 0, %s75
      %s92 = sphi 0, %s76
    $region4: #{tpu_custom_call.1} parent=1 // loop_header_branch
      %18 = sbr.rel (%p16) target = $region8
    $region5: #{tpu_custom_call.1} parent=1 // loop_body
      %s20 = ssub.s32 %s15, 1
      %s21 = ssub.s32 %s15, 2
      %s22 = sadd.s32 %s15, 1
      %s23 = ssub.s32 %s15, %s22
      %p24 = scmp.eq.s32.totalorder %s23, 0
      %s26 = sadd.s32 %s25, 1
      %s27 = scalar_select %p24, %s25, %s26
      %p30 = pneg %p24
      %p31 = scmp.eq.s32.totalorder %s15, 1
      %p32 = por %p30, %p31
      %p33 = scmp.ne.s32.totalorder %s25, %s28
      %p34 = scmp.eq.s32.totalorder %s15, 0
      %p35 = por %p33, %p34
      %p36 = scmp.ne.s32.totalorder %s25, %s28
      %p37 = scmp.eq.s32.totalorder %s20, 1
      %p38 = por %p36, %p37
      %p39 = scmp.ne.s32.totalorder %s28, %s29
      %p40 = scmp.eq.s32.totalorder %s20, 0
      %p41 = por %p39, %p40
      %p42 = scmp.ne.s32.totalorder %s28, %s29
      %p43 = scmp.eq.s32.totalorder %s21, 1
      %p44 = por %p42, %p43
      %p46 = scmp.ne.s32.totalorder %s29, %s45
      %p47 = scmp.eq.s32.totalorder %s21, 0
      %p48 = por %p46, %p47
      %s50 = sadd.s32 %s49, 1
      %p53 = scmp.eq.s32.totalorder %s15, 1
      %p54 = scmp.ne.s32.totalorder %s49, %s51
      %p55 = scmp.eq.s32.totalorder %s15, 0
      %p56 = por %p54, %p55
      %p57 = scmp.ne.s32.totalorder %s49, %s51
      %p58 = scmp.eq.s32.totalorder %s20, 1
      %p59 = por %p57, %p58
      %p60 = scmp.ne.s32.totalorder %s51, %s52
      %p61 = scmp.eq.s32.totalorder %s20, 0
      %p62 = por %p60, %p61
      %p63 = scmp.ne.s32.totalorder %s51, %s52
      %p64 = scmp.eq.s32.totalorder %s21, 1
      %p65 = por %p63, %p64
      %p67 = scmp.ne.s32.totalorder %s52, %s66
      %p68 = scmp.eq.s32.totalorder %s21, 0
      %p69 = por %p67, %p68
      %s70 = ssub.s32 %s15, %s22
      %p71 = scmp.eq.s32.totalorder %s70, 0
      %s73 = sadd.s32 %s72, 1
      %s74 = scalar_select %p71, %s72, %s73
      %p77 = pneg %p71
      %p78 = scmp.eq.s32.totalorder %s15, 1
      %p79 = por %p77, %p78
      %p80 = scmp.ne.s32.totalorder %s72, %s75
      %p81 = scmp.eq.s32.totalorder %s15, 0
      %p82 = por %p80, %p81
      %p83 = scmp.ne.s32.totalorder %s72, %s75
      %p84 = scmp.eq.s32.totalorder %s20, 1
      %p85 = por %p83, %p84
      %p86 = scmp.ne.s32.totalorder %s75, %s76
      %p87 = scmp.eq.s32.totalorder %s20, 0
      %p88 = por %p86, %p87
      %p89 = scmp.ne.s32.totalorder %s75, %s76
      %p90 = scmp.eq.s32.totalorder %s21, 1
      %p91 = por %p89, %p90
      %p93 = scmp.ne.s32.totalorder %s76, %s92
      %p94 = scmp.eq.s32.totalorder %s21, 0
      %p95 = por %p93, %p94
      %p96 = scmp.le.s32.totalorder 1, %s15
      %p97 = scmp.lt.s32.totalorder %s15, 3
      %p98 = pnand %p96, %p97
      %p99 = pneg %p98
      // Predicated region
      $region9: #{tpu_custom_call.1} parent=5 // pred_check
        _
      $region10: #{tpu_custom_call.1} parent=5 // pred_check_branch
        %101 = sbr.rel (%p98) target = $region12
      $region11: #{tpu_custom_call.1} parent=5 // pred_region
        %s102 = ssub.s32 %s15, 1
        // Predicated region
        $region13: #{tpu_custom_call.1} parent=11 // pred_check
          %p103 = pneg %p62
        $region14: #{tpu_custom_call.1} parent=11 // pred_check_branch
          %105 = sbr.rel (%p103) target = $region16
        $region15: #{tpu_custom_call.1} parent=11 // pred_region
          %107 = vsyncadd [#allocation7], 0
          %s109 = sshll.u32 %s1, 4
          %s110 = int_to_ptr.hbm [resolvable:$true] %s109
          %s111 = sshll.u32 [#allocation6], 4
          %s112 = int_to_ptr.vmem [resolvable:$true] %s111
          %114 = dma.hbm_to_vmem [thread:$0]  %s110, 64, %s112, [#allocation7]
        $region16: #{tpu_custom_call.1} parent=11 // pred_fallthru
          _
      $region12: #{tpu_custom_call.1} parent=5 // pred_fallthru
        _
      %p115 = scmp.lt.s32.totalorder %s15, 2
      // Predicated region
      $region17: #{tpu_custom_call.1} parent=5 // pred_check
        %p116 = pneg %p115
      $region18: #{tpu_custom_call.1} parent=5 // pred_check_branch
        %118 = sbr.rel (%p116) target = $region20
      $region19: #{tpu_custom_call.1} parent=5 // pred_region
        // Predicated region
        $region21: #{tpu_custom_call.1} parent=19 // pred_check
          %p119 = pneg %p35
        $region22: #{tpu_custom_call.1} parent=19 // pred_check_branch
          %121 = sbr.rel (%p119) target = $region24
        $region23: #{tpu_custom_call.1} parent=19 // pred_region
          %s122 = sand.u32 %s25, 1
          %s123 = scalar_lea.sflag [#allocation4], %s122
          %s124 = sand.u32 %s25, 1
          %s125 = smul.addr %s124, 16
          %s126 = scalar_lea.vmem [#allocation3], %s125
          %s127 = smul.u32 4, %s15
          %129 = vsyncadd %s123, 0
          %s130 = smul.addr %s127, 4
          %s131 = scalar_lea.hbm %s0, %s130
          %s132 = sshll.u32 %s131, 4
          %s133 = int_to_ptr.hbm [resolvable:$true] %s132
          %s134 = sshll.u32 %s126, 4
          %s135 = int_to_ptr.vmem [resolvable:$true] %s134
          %140 = dma.hbm_to_vmem [thread:$0]  %s133, 256, %s135, %s123, 64, 64, 4
        $region24: #{tpu_custom_call.1} parent=19 // pred_fallthru
          _
      $region20: #{tpu_custom_call.1} parent=5 // pred_fallthru
        _
      %p141 = scmp.le.s32.totalorder 1, %s15
      %p142 = scmp.lt.s32.totalorder %s15, 3
      %p143 = pnand %p141, %p142
      %p144 = pneg %p143
      // Predicated region
      $region25: #{tpu_custom_call.1} parent=5 // pred_check
        _
      $region26: #{tpu_custom_call.1} parent=5 // pred_check_branch
        %146 = sbr.rel (%p143) target = $region28
      $region27: #{tpu_custom_call.1} parent=5 // pred_region
        %s147 = ssub.s32 %s15, 1
        %s148 = sand.u32 %s28, 1
        %s149 = scalar_lea.sflag [#allocation4], %s148
        %s150 = sand.u32 %s28, 1
        %s151 = smul.addr %s150, 16
        %s152 = scalar_lea.vmem [#allocation3], %s151
        // Predicated region
        $region29: #{tpu_custom_call.1} parent=27 // pred_check
          %p153 = pneg %p41
        $region30: #{tpu_custom_call.1} parent=27 // pred_check_branch
          %155 = sbr.rel (%p153) target = $region32
        $region31: #{tpu_custom_call.1} parent=27 // pred_region
          %157 = dma.done %s149, 256
        $region32: #{tpu_custom_call.1} parent=27 // pred_fallthru
          _
        // Predicated region
        $region33: #{tpu_custom_call.1} parent=27 // pred_check
          %p158 = pneg %p62
        $region34: #{tpu_custom_call.1} parent=27 // pred_check_branch
          %160 = sbr.rel (%p158) target = $region36
        $region35: #{tpu_custom_call.1} parent=27 // pred_region
          %162 = dma.done [#allocation7], 64
        $region36: #{tpu_custom_call.1} parent=27 // pred_fallthru
          _
        %s163 = sand.u32 %s28, 1
        %s164 = scalar_lea.sflag [#allocation4], %s163
        %s165 = sand.u32 %s28, 1
        %s166 = smul.addr %s165, 16
        %s167 = scalar_lea.vmem [#allocation3], %s166
        %p168 = pneg %p41
        %p169 = pneg %p38
        %p170 = pneg %p62
        %p171 = pneg %p59
        %p172 = pneg %p88
        %p173 = pneg %p85
        %s174 = sand.u32 %s75, 1
        %s175 = scalar_lea.sflag [#allocation5], %s174
        %s176 = sand.u32 %s75, 1
        %s177 = smul.addr %s176, 32
        %s178 = scalar_lea.vmem [#allocation8], %s177
        %s179 = smul.u32 4, %s20
        %s180 = smul.u32 4, %s20
        %v182 = vld [vmem:[#allocation6] sm:$0xf]
        %v183 = vlaneseq
        %v184 = vshrl.u32 %v183, 7
        %vm185 = vcmp.eq.s32.totalorder %v184, 0
        %v186 = vsel %vm185, 1.0, 0.0
        %187 = vst [vmem:[#allocation2 + $0xc] sm:$0xf] %v186
        %v188 = vlaneseq
        %v189 = vand.u32 %v188, 127
        %v190 = vadd.s32 %v189, 4294967295
        %vm191 = vcmp.ge.s32.totalorder %v190, 0
        %vm192 = vcmp.lt.s32.totalorder %v190, 128
        %vm193 = vmand %vm191, %vm192
        %v194 = vadd.s32 %v189, 1
        %vm195 = vcmp.ge.s32.totalorder %v194, 0
        %vm196 = vcmp.lt.s32.totalorder %v194, 128
        %vm197 = vmand %vm195, %vm196
        %v198 = vld [vmem:[%s152] sm:$0xf]
        %199 = vrot.lane.b32.xlu0 %v198, 1
        %v200 = vpop.permute.xlu0 %199
        %v201 = vsel %vm193, %v200, 0.0
        %202 = vst [vmem:[#allocation2] sm:$0xf] %v201
        %203 = vst [vmem:[#allocation2 + $0x4] sm:$0xf] %v198
        %204 = vrot.lane.b32.xlu0 %v198, 127
        %v205 = vpop.permute.xlu0 %204
        %v206 = vsel %vm197, %v205, 0.0
        %207 = vst [vmem:[#allocation2 + $0x8] sm:$0xf] %v206
        %v208 = vld [vmem:[#allocation2] sm:$0xff]
        %v209 = vld [vmem:[#allocation2 + $0x8] sm:$0xff]
        %v210 = vpack.c.bf16 %v209, %v208
        %vm211 = vcmask 130048
        %v213 = vsel %vm211, %v182, 0
        %215 = vmatpush.bf16.msra.mxu0 0
        %216 = vmatpush.bf16.msra.mxu0 0
        %217 = vmatpush.bf16.msra.mxu0 0
        %218 = vmatpush.bf16.msra.mxu0 0
        %219 = vmatpush.bf16.msra.mxu0 0
        %220 = vmatpush.bf16.msra.mxu0 0
        %221 = vmatpush.bf16.msra.mxu0 0
        %222 = vmatpush.bf16.msra.mxu0 %v210
        %223 = vmatmul.bf16.gmra.mxu0 %v213
        %v224 = vpop.f32.mrf.mxu0
        %v225 = vadd.f32 0.0, %v224
        %v226 = vpop.f32.mrf.mxu0
        %227 = vdwg.mxu0
        %v228 = vmax.f32 %v225, 0.0
        %229 = vst [vmem:[%s178] sm:$0xff] %v228
        %s230 = scalar_lea.vmem %s152, 4 [#allocation3]
        %v231 = vld [vmem:[%s230] sm:$0xf]
        %232 = vrot.lane.b32.xlu0 %v231, 1
        %v233 = vpop.permute.xlu0 %232
        %v234 = vsel %vm193, %v233, 0.0
        %235 = vst [vmem:[#allocation2] sm:$0xf] %v234
        %236 = vst [vmem:[#allocation2 + $0x4] sm:$0xf] %v231
        %237 = vrot.lane.b32.xlu0 %v231, 127
        %v238 = vpop.permute.xlu0 %237
        %v239 = vsel %vm197, %v238, 0.0
        %240 = vst [vmem:[#allocation2 + $0x8] sm:$0xf] %v239
        %v241 = vld [vmem:[#allocation2] sm:$0xff]
        %v242 = vld [vmem:[#allocation2 + $0x8] sm:$0xff]
        %v243 = vpack.c.bf16 %v242, %v241
        %244 = vmatpush.bf16.msra.mxu0 0
        %245 = vmatpush.bf16.msra.mxu0 0
        %246 = vmatpush.bf16.msra.mxu0 0
        %247 = vmatpush.bf16.msra.mxu0 0
        %248 = vmatpush.bf16.msra.mxu0 0
        %249 = vmatpush.bf16.msra.mxu0 0
        %250 = vmatpush.bf16.msra.mxu0 0
        %251 = vmatpush.bf16.msra.mxu0 %v243
        %252 = vmatmul.bf16.gmra.mxu0 %v213
        %v253 = vpop.f32.mrf.mxu0
        %v254 = vadd.f32 0.0, %v253
        %v255 = vpop.f32.mrf.mxu0
        %256 = vdwg.mxu0
        %v257 = vmax.f32 %v254, 0.0
        %s258 = scalar_lea.vmem %s178, 8 [#allocation8]
        %259 = vst [vmem:[%s258] sm:$0xff] %v257
        %s260 = scalar_lea.vmem %s152, 8 [#allocation3]
        %v261 = vld [vmem:[%s260] sm:$0xf]
        %262 = vrot.lane.b32.xlu0 %v261, 1
        %v263 = vpop.permute.xlu0 %262
        %v264 = vsel %vm193, %v263, 0.0
        %265 = vst [vmem:[#allocation2] sm:$0xf] %v264
        %266 = vst [vmem:[#allocation2 + $0x4] sm:$0xf] %v261
        %267 = vrot.lane.b32.xlu0 %v261, 127
        %v268 = vpop.permute.xlu0 %267
        %v269 = vsel %vm197, %v268, 0.0
        %270 = vst [vmem:[#allocation2 + $0x8] sm:$0xf] %v269
        %v271 = vld [vmem:[#allocation2] sm:$0xff]
        %v272 = vld [vmem:[#allocation2 + $0x8] sm:$0xff]
        %v273 = vpack.c.bf16 %v272, %v271
        %274 = vmatpush.bf16.msra.mxu0 0
        %275 = vmatpush.bf16.msra.mxu0 0
        %276 = vmatpush.bf16.msra.mxu0 0
        %277 = vmatpush.bf16.msra.mxu0 0
        %278 = vmatpush.bf16.msra.mxu0 0
        %279 = vmatpush.bf16.msra.mxu0 0
        %280 = vmatpush.bf16.msra.mxu0 0
        %281 = vmatpush.bf16.msra.mxu0 %v273
        %282 = vmatmul.bf16.gmra.mxu0 %v213
        %v283 = vpop.f32.mrf.mxu0
        %v284 = vadd.f32 0.0, %v283
        %v285 = vpop.f32.mrf.mxu0
        %286 = vdwg.mxu0
        %v287 = vmax.f32 %v284, 0.0
        %s288 = scalar_lea.vmem %s178, 16 [#allocation8]
        %289 = vst [vmem:[%s288] sm:$0xff] %v287
        %s290 = scalar_lea.vmem %s152, 12 [#allocation3]
        %v291 = vld [vmem:[%s290] sm:$0xf]
        %292 = vrot.lane.b32.xlu0 %v291, 1
        %v293 = vpop.permute.xlu0 %292
        %v294 = vsel %vm193, %v293, 0.0
        %295 = vst [vmem:[#allocation2] sm:$0xf] %v294
        %296 = vst [vmem:[#allocation2 + $0x4] sm:$0xf] %v291
        %297 = vrot.lane.b32.xlu0 %v291, 127
        %v298 = vpop.permute.xlu0 %297
        %v299 = vsel %vm197, %v298, 0.0
        %300 = vst [vmem:[#allocation2 + $0x8] sm:$0xf] %v299
        %v301 = vld [vmem:[#allocation2] sm:$0xff]
        %v302 = vld [vmem:[#allocation2 + $0x8] sm:$0xff]
        %v303 = vpack.c.bf16 %v302, %v301
        %304 = vmatpush.bf16.msra.mxu0 0
        %305 = vmatpush.bf16.msra.mxu0 0
        %306 = vmatpush.bf16.msra.mxu0 0
        %307 = vmatpush.bf16.msra.mxu0 0
        %308 = vmatpush.bf16.msra.mxu0 0
        %309 = vmatpush.bf16.msra.mxu0 0
        %310 = vmatpush.bf16.msra.mxu0 0
        %311 = vmatpush.bf16.msra.mxu0 %v303
        %312 = vmatmul.bf16.gmra.mxu0 %v213
        %v313 = vpop.f32.mrf.mxu0
        %v314 = vadd.f32 0.0, %v313
        %v315 = vpop.f32.mrf.mxu0
        %316 = vdwg.mxu0
        %v317 = vmax.f32 %v314, 0.0
        %s318 = scalar_lea.vmem %s178, 24 [#allocation8]
        %319 = vst [vmem:[%s318] sm:$0xff] %v317
        %s320 = sand.u32 %s75, 1
        %s321 = scalar_lea.sflag [#allocation5], %s320
        %s322 = sand.u32 %s75, 1
        %s323 = smul.addr %s322, 32
        %s324 = scalar_lea.vmem [#allocation8], %s323
        // Predicated region
        $region37: #{tpu_custom_call.1} parent=27 // pred_check
          %p325 = pneg %p85
        $region38: #{tpu_custom_call.1} parent=27 // pred_check_branch
          %327 = sbr.rel (%p325) target = $region40
        $region39: #{tpu_custom_call.1} parent=27 // pred_region
          %s328 = smul.u32 4, %s20
          %330 = vsyncadd %s321, 0
          %s331 = smul.addr %s328, 8
          %s332 = scalar_lea.hbm %s2, %s331
          %s333 = sshll.u32 %s324, 4
          %s334 = int_to_ptr.vmem [resolvable:$true] %s333
          %s335 = sshll.u32 %s332, 4
          %s336 = int_to_ptr.hbm [resolvable:$true] %s335
          %341 = dma.vmem_to_hbm [thread:$0]  %s334, 512, %s336, %s321, 128, 128, 8
        $region40: #{tpu_custom_call.1} parent=27 // pred_fallthru
          _
      $region28: #{tpu_custom_call.1} parent=5 // pred_fallthru
        _
      %p342 = scmp.le.s32.totalorder 2, %s15
      // Predicated region
      $region41: #{tpu_custom_call.1} parent=5 // pred_check
        %p343 = pneg %p342
      $region42: #{tpu_custom_call.1} parent=5 // pred_check_branch
        %345 = sbr.rel (%p343) target = $region44
      $region43: #{tpu_custom_call.1} parent=5 // pred_region
        %s346 = ssub.s32 %s15, 2
        // Predicated region
        $region45: #{tpu_custom_call.1} parent=43 // pred_check
          %p347 = pneg %p91
        $region46: #{tpu_custom_call.1} parent=43 // pred_check_branch
          %349 = sbr.rel (%p347) target = $region48
        $region47: #{tpu_custom_call.1} parent=43 // pred_region
          %s350 = sand.u32 %s76, 1
          %s351 = scalar_lea.sflag [#allocation5], %s350
          %s352 = sand.u32 %s76, 1
          %s353 = smul.addr %s352, 32
          %s354 = scalar_lea.vmem [#allocation8], %s353
          %356 = dma.done %s351, 512
        $region48: #{tpu_custom_call.1} parent=43 // pred_fallthru
          _
      $region44: #{tpu_custom_call.1} parent=5 // pred_fallthru
        _
    $region6: #{tpu_custom_call.1} parent=1 // loop_footer
      %s19 = sadd.s32 1, %s15
    $region7: #{tpu_custom_call.1} parent=1 // loop_footer_branch
      %14 = sbr.rel target = $region3
    $region8: #{tpu_custom_call.1} parent=1 // loop_exit
      _
    %357 = vsyncpa [#allocation4], 1
    %s358 = scalar_lea.sflag [#allocation4], 1
    %359 = vsyncpa %s358, 1
    %360 = vsyncpa [#allocation7], 1
    %361 = vsyncpa [#allocation5], 1
    %s362 = scalar_lea.sflag [#allocation5], 1
    %363 = vsyncpa %s362, 1

</llo_original>
